<compile_context>
chip_gen: v6e
topology: v6e:2x2x1
jax: 0.10.0
libtpu: 0.0.40
codegen_flags: <defaults>
</compile_context>

<pallas_src>
import functools

import jax
import jax.numpy as jnp
from jax import lax
from jax.experimental import pallas as pl
from jax.experimental.pallas import tpu as pltpu


def _round_up(n, m):
    return ((n + m - 1) // m) * m


def _srl(x, n):
    """Logical right shift for int32 arrays (arithmetic shift + mask)."""
    return (x >> n) & jnp.int32((1 << (32 - n)) - 1)


def _layer_salt(layer):
    """Static per-layer salt as a signed 32-bit Python int."""
    s = ((layer + 1) * 2654435769) & 0xFFFFFFFF
    return s - (1 << 32) if s >= (1 << 31) else s


def _keep_mask(shape, seed, salt, row_off, keep_threshold):
    """Bernoulli(keep_prob) mask from a per-element int32 hash (murmur3-style finalizer)."""
    r = lax.broadcasted_iota(jnp.int32, shape, 0) + row_off
    c = lax.broadcasted_iota(jnp.int32, shape, 1)
    x = r * jnp.int32(-1640531527) + c * jnp.int32(-862048943) + seed + jnp.int32(salt)
    x = (x ^ _srl(x, 16)) * jnp.int32(-2048144789)
    x = (x ^ _srl(x, 13)) * jnp.int32(-1028477387)
    x = x ^ _srl(x, 16)
    u = x & jnp.int32(0x7FFFFFFF)           # uniform in [0, 2^31)
    return u < jnp.int32(keep_threshold)    # keep_prob = keep_threshold / 2^31


def _mlp_fused_kernel(seed_ref, *refs, num_layers, apply_dropout, keep_prob, rows_per_tile):
    """Fused forward: h = x; repeat (h @ W + b -> ReLU -> Dropout); final h @ W + b."""
    x_ref = refs[0]
    o_ref = refs[-1]
    wb_refs = refs[1:-1]                    # [W1, b1, W2, b2, ..., WL, bL]

    seed = seed_ref[0]                      # runtime scalar from SMEM (no recompile per seed)
    row_off = pl.program_id(0) * rows_per_tile
    keep_threshold = min(int(keep_prob * (1 << 31)), (1 << 31) - 1)
    inv_keep = 1.0 / keep_prob

    h = x_ref[...]
    for layer in range(num_layers):
        w_ref = wb_refs[2 * layer]
        b_ref = wb_refs[2 * layer + 1]
        # Matmul in the weight dtype (f32 or bf16), f32 accumulation on the MXU.
        h = jnp.dot(h.astype(w_ref.dtype), w_ref[...],
                    preferred_element_type=jnp.float32) + b_ref[...]
        if layer < num_layers - 1:
            h = jnp.maximum(h, 0.0)                     # ReLU (train & eval)
            if apply_dropout:                           # Dropout(p = 1 - keep_prob), train only
                keep = _keep_mask(h.shape, seed, _layer_salt(layer), row_off, keep_threshold)
                h = jnp.where(keep, h * inv_keep, 0.0)
    o_ref[...] = h.astype(o_ref.dtype)


def mlp_drop_forward(x_nchw, params, *, training=True, seed=0, matmul_dtype=jnp.float32):
    """Forward pass of MLP_drop.

    x_nchw: (B, C, H, W) float32.
    params: list of (W, b) with W stored as (in_features, out_features)
            (i.e. the transpose of torch.nn.Linear.weight).
    """
    B = x_nchw.shape[0]
    x2 = x_nchw.reshape(B, -1).astype(jnp.float32)       # torch.flatten(x, start_dim=1)
    num_layers = len(params)

    # ---- pad to lane (128) / sublane (8) multiples so every matmul & store is lane-dense ------
    dims = [x2.shape[1]] + [w.shape[1] for w, _ in params]
    dims_p = [_round_up(d, 128) for d in dims]
    tb = min(_round_up(B, 8), 128)                        # batch-tile (rows per grid step)
    b_p = _round_up(B, tb)

    x_p = jnp.pad(x2, ((0, b_p - B), (0, dims_p[0] - dims[0])))
    flat_wb = []
    for i, (w, b) in enumerate(params):
        # NOTE: in a real model, pre-pad the parameters once instead of per forward call.
        w_p = jnp.pad(w, ((0, dims_p[i] - dims[i]), (0, dims_p[i + 1] - dims[i + 1])))
        b_p2 = jnp.pad(b, (0, dims_p[i + 1] - dims[i + 1])).reshape(1, dims_p[i + 1])
        flat_wb += [w_p.astype(matmul_dtype), b_p2.astype(jnp.float32)]

    # ---- BlockSpecs: batch-tiled activations/output, resident (constant index) weights --------
    in_specs = [pl.BlockSpec((tb, dims_p[0]), lambda i, s: (i, 0))]
    for i in range(num_layers):
        in_specs.append(pl.BlockSpec((dims_p[i], dims_p[i + 1]), lambda i_, s: (0, 0)))
        in_specs.append(pl.BlockSpec((1, dims_p[i + 1]), lambda i_, s: (0, 0)))
    out_spec = pl.BlockSpec((tb, dims_p[-1]), lambda i, s: (i, 0))

    kernel = functools.partial(
        _mlp_fused_kernel,
        num_layers=num_layers,
        apply_dropout=bool(training),
        keep_prob=0.5,
        rows_per_tile=tb,
    )

    seed_arr = jnp.asarray([seed], dtype=jnp.int32)
    out_p = pl.pallas_call(
        kernel,
        out_shape=jax.ShapeDtypeStruct((b_p, dims_p[-1]), jnp.float32),
        grid_spec=pltpu.PrefetchScalarGridSpec(
            num_scalar_prefetch=1,
            grid=(b_p // tb,),
            in_specs=in_specs,
            out_specs=out_spec,
        ),
        compiler_params=pltpu.CompilerParams(dimension_semantics=("parallel",)),
    )(seed_arr, x_p, *flat_wb)
    return out_p[:B, : dims[-1]]


def init_mlp_params(key, input_size, hidden_sizes, output_size):
    """Deterministic init mimicking torch.nn.Linear default U(-1/sqrt(fan_in), 1/sqrt(fan_in))."""
    flat_in = 1
    for d in input_size:
        flat_in *= d
    sizes = [flat_in] + list(hidden_sizes) + [output_size]
    params = []
    for i in range(len(sizes) - 1):
        fan_in, fan_out = sizes[i], sizes[i + 1]
        key, kw, kb = jax.random.split(key, 3)
        bound = 1.0 / (fan_in ** 0.5)
        w = jax.random.uniform(kw, (fan_in, fan_out), jnp.float32, -bound, bound)
        b = jax.random.uniform(kb, (fan_out,), jnp.float32, -bound, bound)
        params.append((w, b))
    return params


def _reference_eval(x_nchw, params):
    """Pure-JAX eval-mode reference (dropout = identity)."""
    h = x_nchw.reshape(x_nchw.shape[0], -1)
    for i, (w, b) in enumerate(params):
        h = h @ w + b
        if i < len(params) - 1:
            h = jnp.maximum(h, 0.0)
    return h


if __name__ == "__main__":
    key = jax.random.PRNGKey(0)
    k_x, k_p = jax.random.split(key)

    # Small shapes consistent with the module: input_size=(4,16,16), hidden=[32,32], output=10
    B = 2
    input_size = (4, 16, 16)
    hidden_sizes = [32, 32]
    output_size = 10

    x = jax.random.normal(k_x, (B,) + input_size, dtype=jnp.float32)
    params = init_mlp_params(k_p, input_size, hidden_sizes, output_size)

    y_train = mlp_drop_forward(x, params, training=True, seed=1234)
    y_eval = mlp_drop_forward(x, params, training=False)
    y_train, y_eval = jax.block_until_ready((y_train, y_eval))

    assert y_train.shape == (B, output_size), y_train.shape
    assert y_eval.shape == (B, output_size), y_eval.shape
    assert bool(jnp.all(jnp.isfinite(y_train)))
    assert bool(jnp.all(jnp.isfinite(y_eval)))

    # Eval-mode kernel must match the plain-JAX MLP (loose tol: MXU f32 matmul path).
    ref = _reference_eval(x, params)
    assert bool(jnp.allclose(y_eval, ref, rtol=2e-2, atol=2e-2)), "eval mismatch vs reference"

    print("KERNEL_OK")
</pallas_src>

<mosaic_0001>
module attributes {stable_mosaic.version = 11 : i64} {
  func.func @_mlp_fused_kernel(%arg0: i32, %arg1: memref<1xi32, #tpu.memory_space<smem>>, %arg2: memref<8x1024xf32, #tpu.memory_space<vmem>>, %arg3: memref<1024x128xf32, #tpu.memory_space<vmem>>, %arg4: memref<1x128xf32, #tpu.memory_space<vmem>>, %arg5: memref<128x128xf32, #tpu.memory_space<vmem>>, %arg6: memref<1x128xf32, #tpu.memory_space<vmem>>, %arg7: memref<128x128xf32, #tpu.memory_space<vmem>>, %arg8: memref<1x128xf32, #tpu.memory_space<vmem>>, %arg9: memref<8x128xf32, #tpu.memory_space<vmem>>) attributes {dimension_semantics = [#tpu.dimension_semantics<parallel>], iteration_bounds = array<i64: 1>, scalar_prefetch = 1 : i64, scratch_operands = 0 : i64, tpu.core_type = #tpu.core_type<tc>, window_params = [{transform_indices = @transform_0, window_bounds = array<i64: 8, 1024>}, {pipeline_mode = #tpu.pipeline_mode<synchronous>, transform_indices = @transform_1, window_bounds = array<i64: 1024, 128>}, {pipeline_mode = #tpu.pipeline_mode<synchronous>, transform_indices = @transform_2, window_bounds = array<i64: 1, 128>}, {pipeline_mode = #tpu.pipeline_mode<synchronous>, transform_indices = @transform_3, window_bounds = array<i64: 128, 128>}, {pipeline_mode = #tpu.pipeline_mode<synchronous>, transform_indices = @transform_4, window_bounds = array<i64: 1, 128>}, {pipeline_mode = #tpu.pipeline_mode<synchronous>, transform_indices = @transform_5, window_bounds = array<i64: 128, 128>}, {pipeline_mode = #tpu.pipeline_mode<synchronous>, transform_indices = @transform_6, window_bounds = array<i64: 1, 128>}, {transform_indices = @transform_7, window_bounds = array<i64: 8, 128>}]} {
    %c0 = arith.constant 0 : index
    %0 = memref.load %arg1[%c0] : memref<1xi32, #tpu.memory_space<smem>>
    %c8_i32 = arith.constant 8 : i32
    %1 = arith.muli %arg0, %c8_i32 : i32
    %c0_0 = arith.constant 0 : index
    %c0_1 = arith.constant 0 : index
    %2 = vector.load %arg2[%c0_0, %c0_1] : memref<8x1024xf32, #tpu.memory_space<vmem>>, vector<8x1024xf32>
    %c0_2 = arith.constant 0 : index
    %c0_3 = arith.constant 0 : index
    %3 = vector.load %arg3[%c0_2, %c0_3] : memref<1024x128xf32, #tpu.memory_space<vmem>>, vector<1024x128xf32>
    %cst = arith.constant dense<0.000000e+00> : vector<8x128xf32>
    %4 = tpu.matmul %2, %3, %cst {dimension_numbers = #tpu.dot_dimension_numbers<[1], [0], [0], [1], [0, 0, 1, 1], [], []>} : vector<8x1024xf32>, vector<1024x128xf32>, vector<8x128xf32> -> vector<8x128xf32>
    %c0_4 = arith.constant 0 : index
    %c0_5 = arith.constant 0 : index
    %5 = vector.load %arg4[%c0_4, %c0_5] : memref<1x128xf32, #tpu.memory_space<vmem>>, vector<1x128xf32>
    %6 = vector.broadcast %5 : vector<1x128xf32> to vector<8x128xf32>
    %7 = arith.addf %4, %6 : vector<8x128xf32>
    %cst_6 = arith.constant 0.000000e+00 : f32
    %8 = vector.broadcast %cst_6 : f32 to vector<8x128xf32>
    %9 = arith.maximumf %7, %8 : vector<8x128xf32>
    %10 = tpu.iota {dimensions = array<i32: 0>} : vector<8x128xi32>
    %11 = vector.broadcast %1 : i32 to vector<8x128xi32>
    %12 = arith.addi %10, %11 : vector<8x128xi32>
    %13 = tpu.iota {dimensions = array<i32: 1>} : vector<8x128xi32>
    %c-1640531527_i32 = arith.constant -1640531527 : i32
    %14 = vector.broadcast %c-1640531527_i32 : i32 to vector<8x128xi32>
    %15 = arith.muli %12, %14 : vector<8x128xi32>
    %c-862048943_i32 = arith.constant -862048943 : i32
    %16 = vector.broadcast %c-862048943_i32 : i32 to vector<8x128xi32>
    %17 = arith.muli %13, %16 : vector<8x128xi32>
    %18 = arith.addi %15, %17 : vector<8x128xi32>
    %19 = vector.broadcast %0 : i32 to vector<8x128xi32>
    %20 = arith.addi %18, %19 : vector<8x128xi32>
    %c-1640531527_i32_7 = arith.constant -1640531527 : i32
    %21 = vector.broadcast %c-1640531527_i32_7 : i32 to vector<8x128xi32>
    %22 = arith.addi %20, %21 : vector<8x128xi32>
    %c16_i32 = arith.constant 16 : i32
    %23 = vector.broadcast %c16_i32 : i32 to vector<8x128xi32>
    %24 = arith.shrsi %22, %23 : vector<8x128xi32>
    %c65535_i32 = arith.constant 65535 : i32
    %25 = vector.broadcast %c65535_i32 : i32 to vector<8x128xi32>
    %26 = arith.andi %24, %25 : vector<8x128xi32>
    %27 = arith.xori %22, %26 : vector<8x128xi32>
    %c-2048144789_i32 = arith.constant -2048144789 : i32
    %28 = vector.broadcast %c-2048144789_i32 : i32 to vector<8x128xi32>
    %29 = arith.muli %27, %28 : vector<8x128xi32>
    %c13_i32 = arith.constant 13 : i32
    %30 = vector.broadcast %c13_i32 : i32 to vector<8x128xi32>
    %31 = arith.shrsi %29, %30 : vector<8x128xi32>
    %c524287_i32 = arith.constant 524287 : i32
    %32 = vector.broadcast %c524287_i32 : i32 to vector<8x128xi32>
    %33 = arith.andi %31, %32 : vector<8x128xi32>
    %34 = arith.xori %29, %33 : vector<8x128xi32>
    %c-1028477387_i32 = arith.constant -1028477387 : i32
    %35 = vector.broadcast %c-1028477387_i32 : i32 to vector<8x128xi32>
    %36 = arith.muli %34, %35 : vector<8x128xi32>
    %c16_i32_8 = arith.constant 16 : i32
    %37 = vector.broadcast %c16_i32_8 : i32 to vector<8x128xi32>
    %38 = arith.shrsi %36, %37 : vector<8x128xi32>
    %c65535_i32_9 = arith.constant 65535 : i32
    %39 = vector.broadcast %c65535_i32_9 : i32 to vector<8x128xi32>
    %40 = arith.andi %38, %39 : vector<8x128xi32>
    %41 = arith.xori %36, %40 : vector<8x128xi32>
    %c2147483647_i32 = arith.constant 2147483647 : i32
    %42 = vector.broadcast %c2147483647_i32 : i32 to vector<8x128xi32>
    %43 = arith.andi %41, %42 : vector<8x128xi32>
    %c1073741824_i32 = arith.constant 1073741824 : i32
    %44 = vector.broadcast %c1073741824_i32 : i32 to vector<8x128xi32>
    %45 = arith.cmpi slt, %43, %44 : vector<8x128xi32>
    %cst_10 = arith.constant 2.000000e+00 : f32
    %46 = vector.broadcast %cst_10 : f32 to vector<8x128xf32>
    %47 = arith.mulf %9, %46 : vector<8x128xf32>
    %cst_11 = arith.constant 0.000000e+00 : f32
    %48 = vector.broadcast %cst_11 : f32 to vector<8x128xf32>
    %49 = arith.select %45, %47, %48 : vector<8x128xi1>, vector<8x128xf32>
    %c0_12 = arith.constant 0 : index
    %c0_13 = arith.constant 0 : index
    %50 = vector.load %arg5[%c0_12, %c0_13] : memref<128x128xf32, #tpu.memory_space<vmem>>, vector<128x128xf32>
    %cst_14 = arith.constant dense<0.000000e+00> : vector<8x128xf32>
    %51 = tpu.matmul %49, %50, %cst_14 {dimension_numbers = #tpu.dot_dimension_numbers<[1], [0], [0], [1], [0, 0, 1, 1], [], []>} : vector<8x128xf32>, vector<128x128xf32>, vector<8x128xf32> -> vector<8x128xf32>
    %c0_15 = arith.constant 0 : index
    %c0_16 = arith.constant 0 : index
    %52 = vector.load %arg6[%c0_15, %c0_16] : memref<1x128xf32, #tpu.memory_space<vmem>>, vector<1x128xf32>
    %53 = vector.broadcast %52 : vector<1x128xf32> to vector<8x128xf32>
    %54 = arith.addf %51, %53 : vector<8x128xf32>
    %cst_17 = arith.constant 0.000000e+00 : f32
    %55 = vector.broadcast %cst_17 : f32 to vector<8x128xf32>
    %56 = arith.maximumf %54, %55 : vector<8x128xf32>
    %57 = tpu.iota {dimensions = array<i32: 0>} : vector<8x128xi32>
    %58 = vector.broadcast %1 : i32 to vector<8x128xi32>
    %59 = arith.addi %57, %58 : vector<8x128xi32>
    %60 = tpu.iota {dimensions = array<i32: 1>} : vector<8x128xi32>
    %c-1640531527_i32_18 = arith.constant -1640531527 : i32
    %61 = vector.broadcast %c-1640531527_i32_18 : i32 to vector<8x128xi32>
    %62 = arith.muli %59, %61 : vector<8x128xi32>
    %c-862048943_i32_19 = arith.constant -862048943 : i32
    %63 = vector.broadcast %c-862048943_i32_19 : i32 to vector<8x128xi32>
    %64 = arith.muli %60, %63 : vector<8x128xi32>
    %65 = arith.addi %62, %64 : vector<8x128xi32>
    %66 = vector.broadcast %0 : i32 to vector<8x128xi32>
    %67 = arith.addi %65, %66 : vector<8x128xi32>
    %c1013904242_i32 = arith.constant 1013904242 : i32
    %68 = vector.broadcast %c1013904242_i32 : i32 to vector<8x128xi32>
    %69 = arith.addi %67, %68 : vector<8x128xi32>
    %c16_i32_20 = arith.constant 16 : i32
    %70 = vector.broadcast %c16_i32_20 : i32 to vector<8x128xi32>
    %71 = arith.shrsi %69, %70 : vector<8x128xi32>
    %c65535_i32_21 = arith.constant 65535 : i32
    %72 = vector.broadcast %c65535_i32_21 : i32 to vector<8x128xi32>
    %73 = arith.andi %71, %72 : vector<8x128xi32>
    %74 = arith.xori %69, %73 : vector<8x128xi32>
    %c-2048144789_i32_22 = arith.constant -2048144789 : i32
    %75 = vector.broadcast %c-2048144789_i32_22 : i32 to vector<8x128xi32>
    %76 = arith.muli %74, %75 : vector<8x128xi32>
    %c13_i32_23 = arith.constant 13 : i32
    %77 = vector.broadcast %c13_i32_23 : i32 to vector<8x128xi32>
    %78 = arith.shrsi %76, %77 : vector<8x128xi32>
    %c524287_i32_24 = arith.constant 524287 : i32
    %79 = vector.broadcast %c524287_i32_24 : i32 to vector<8x128xi32>
    %80 = arith.andi %78, %79 : vector<8x128xi32>
    %81 = arith.xori %76, %80 : vector<8x128xi32>
    %c-1028477387_i32_25 = arith.constant -1028477387 : i32
    %82 = vector.broadcast %c-1028477387_i32_25 : i32 to vector<8x128xi32>
    %83 = arith.muli %81, %82 : vector<8x128xi32>
    %c16_i32_26 = arith.constant 16 : i32
    %84 = vector.broadcast %c16_i32_26 : i32 to vector<8x128xi32>
    %85 = arith.shrsi %83, %84 : vector<8x128xi32>
    %c65535_i32_27 = arith.constant 65535 : i32
    %86 = vector.broadcast %c65535_i32_27 : i32 to vector<8x128xi32>
    %87 = arith.andi %85, %86 : vector<8x128xi32>
    %88 = arith.xori %83, %87 : vector<8x128xi32>
    %c2147483647_i32_28 = arith.constant 2147483647 : i32
    %89 = vector.broadcast %c2147483647_i32_28 : i32 to vector<8x128xi32>
    %90 = arith.andi %88, %89 : vector<8x128xi32>
    %c1073741824_i32_29 = arith.constant 1073741824 : i32
    %91 = vector.broadcast %c1073741824_i32_29 : i32 to vector<8x128xi32>
    %92 = arith.cmpi slt, %90, %91 : vector<8x128xi32>
    %cst_30 = arith.constant 2.000000e+00 : f32
    %93 = vector.broadcast %cst_30 : f32 to vector<8x128xf32>
    %94 = arith.mulf %56, %93 : vector<8x128xf32>
    %cst_31 = arith.constant 0.000000e+00 : f32
    %95 = vector.broadcast %cst_31 : f32 to vector<8x128xf32>
    %96 = arith.select %92, %94, %95 : vector<8x128xi1>, vector<8x128xf32>
    %c0_32 = arith.constant 0 : index
    %c0_33 = arith.constant 0 : index
    %97 = vector.load %arg7[%c0_32, %c0_33] : memref<128x128xf32, #tpu.memory_space<vmem>>, vector<128x128xf32>
    %cst_34 = arith.constant dense<0.000000e+00> : vector<8x128xf32>
    %98 = tpu.matmul %96, %97, %cst_34 {dimension_numbers = #tpu.dot_dimension_numbers<[1], [0], [0], [1], [0, 0, 1, 1], [], []>} : vector<8x128xf32>, vector<128x128xf32>, vector<8x128xf32> -> vector<8x128xf32>
    %c0_35 = arith.constant 0 : index
    %c0_36 = arith.constant 0 : index
    %99 = vector.load %arg8[%c0_35, %c0_36] : memref<1x128xf32, #tpu.memory_space<vmem>>, vector<1x128xf32>
    %100 = vector.broadcast %99 : vector<1x128xf32> to vector<8x128xf32>
    %101 = arith.addf %98, %100 : vector<8x128xf32>
    %c0_37 = arith.constant 0 : index
    %c0_38 = arith.constant 0 : index
    %102 = vector.load %arg9[%c0_37, %c0_38] : memref<8x128xf32, #tpu.memory_space<vmem>>, vector<8x128xf32>
    tpu.vector_store %arg9[%c0_37, %c0_38], %101 {strides = array<i32>} : memref<8x128xf32, #tpu.memory_space<vmem>>, vector<8x128xf32>,
    return
  }
  func.func @transform_0(%arg0: i32, %arg1: memref<1xi32, #tpu.memory_space<smem>>) -> (i32, i32) {
    %c0_i32 = arith.constant 0 : i32
    %c0_i32_0 = arith.constant 0 : i32
    return %arg0, %c0_i32 : i32, i32
  }
  func.func @transform_1(%arg0: i32, %arg1: memref<1xi32, #tpu.memory_space<smem>>) -> (i32, i32) {
    %c0_i32 = arith.constant 0 : i32
    %c0_i32_0 = arith.constant 0 : i32
    %c0_i32_1 = arith.constant 0 : i32
    return %c0_i32, %c0_i32_0 : i32, i32
  }
  func.func @transform_2(%arg0: i32, %arg1: memref<1xi32, #tpu.memory_space<smem>>) -> (i32, i32) {
    %c0_i32 = arith.constant 0 : i32
    %c0_i32_0 = arith.constant 0 : i32
    %c0_i32_1 = arith.constant 0 : i32
    return %c0_i32, %c0_i32_0 : i32, i32
  }
  func.func @transform_3(%arg0: i32, %arg1: memref<1xi32, #tpu.memory_space<smem>>) -> (i32, i32) {
    %c0_i32 = arith.constant 0 : i32
    %c0_i32_0 = arith.constant 0 : i32
    %c0_i32_1 = arith.constant 0 : i32
    return %c0_i32, %c0_i32_0 : i32, i32
  }
  func.func @transform_4(%arg0: i32, %arg1: memref<1xi32, #tpu.memory_space<smem>>) -> (i32, i32) {
    %c0_i32 = arith.constant 0 : i32
    %c0_i32_0 = arith.constant 0 : i32
    %c0_i32_1 = arith.constant 0 : i32
    return %c0_i32, %c0_i32_0 : i32, i32
  }
  func.func @transform_5(%arg0: i32, %arg1: memref<1xi32, #tpu.memory_space<smem>>) -> (i32, i32) {
    %c0_i32 = arith.constant 0 : i32
    %c0_i32_0 = arith.constant 0 : i32
    %c0_i32_1 = arith.constant 0 : i32
    return %c0_i32, %c0_i32_0 : i32, i32
  }
  func.func @transform_6(%arg0: i32, %arg1: memref<1xi32, #tpu.memory_space<smem>>) -> (i32, i32) {
    %c0_i32 = arith.constant 0 : i32
    %c0_i32_0 = arith.constant 0 : i32
    %c0_i32_1 = arith.constant 0 : i32
    return %c0_i32, %c0_i32_0 : i32, i32
  }
  func.func @transform_7(%arg0: i32, %arg1: memref<1xi32, #tpu.memory_space<smem>>) -> (i32, i32) {
    %c0_i32 = arith.constant 0 : i32
    %c0_i32_0 = arith.constant 0 : i32
    return %arg0, %c0_i32 : i32, i32
  }
}

</mosaic_0001>

<llo_original>
// kernel: tpu_custom_call.1
$region0: #{tpu_custom_call.1}
  #allocation0 [shape = 'u32[]', space=smem, size = 0x4, offset = 0x4, fixed_abs, tag = 'smem constant byte address 0x4 - core index']
  #allocation1 [shape = 'u32[144,128]{1,0:T(1,128)}', space=vmem, size = 0x12000, scoped, tag = 'internal scratch']
  #allocation2 [shape = 's32[1]{0}', space=sflag, size = 0x4, scoped, tag = 'scoped memory for tpu_custom_call.1']
  #allocation3 [shape = 's32[1]{0:T(128)S(6)}', space=smem, size = 0x200, scoped, tag = 'prefetched SMEM operand 0']
  %s0 = inlined_call_operand.<no memory space> [shape: s32[1], index: 0, kind: input, shape index: {}]
  %s1 = inlined_call_operand.hbm [shape: f32[8,1024], index: 1, kind: input, shape index: {}]
  %s2 = inlined_call_operand.hbm [shape: f32[1024,128], index: 2, kind: input, shape index: {}]
  %s3 = inlined_call_operand.vmem [shape: f32[1,128], index: 3, kind: input, shape index: {}]
  %s4 = inlined_call_operand.hbm [shape: f32[128,128], index: 4, kind: input, shape index: {}]
  %s5 = inlined_call_operand.vmem [shape: f32[1,128], index: 5, kind: input, shape index: {}]
  %s6 = inlined_call_operand.hbm [shape: f32[128,128], index: 6, kind: input, shape index: {}]
  %s7 = inlined_call_operand.vmem [shape: f32[1,128], index: 7, kind: input, shape index: {}]
  %s8 = inlined_call_operand.hbm [shape: f32[8,128], index: 8, kind: output, shape index: {}]
  %s9 = sld [smem:[#allocation0]]
  $region54: #{tpu_custom_call.1} parent=0
    _
  %s11 = ssub.s32 1, %s9
  %s12 = scalar_select 0, %s11, %s9
  %13 = sst [smem:[#allocation3]] %s0
  $region1: #{tpu_custom_call.1} parent=0
    #allocation4 [shape = 'u8[32768]{0}', space=vmem, size = 0x8000, scoped, tag = 'input window, operand 1, single buffered']
    #allocation5 [shape = 's32[1]{0}', space=sflag, size = 0x4, scoped, tag = 'scoped memory for tpu_custom_call.1']
    #allocation6 [shape = 's32[1]{0}', space=sflag, size = 0x4, scoped, tag = 'scoped memory for tpu_custom_call.1']
    #allocation7 [shape = 'u8[524288]{0}', space=vmem, size = 0x80000, scoped, tag = 'input window, operand 2, single buffered']
    #allocation8 [shape = 's32[1]{0}', space=sflag, size = 0x4, scoped, tag = 'scoped memory for tpu_custom_call.1']
    #allocation9 [shape = 'u8[65536]{0}', space=vmem, size = 0x10000, scoped, tag = 'input window, operand 4, single buffered']
    #allocation10 [shape = 'u8[65536]{0}', space=vmem, size = 0x10000, scoped, tag = 'input window, operand 6, single buffered']
    #allocation11 [shape = 's32[1]{0}', space=sflag, size = 0x4, scoped, tag = 'scoped memory for tpu_custom_call.1']
    #allocation12 [shape = 'u8[4096]{0}', space=vmem, size = 0x1000, scoped, tag = 'output window, operand 0, single buffered']
    %14 = vsyncpa [#allocation5], 0
    %15 = vsyncpa [#allocation8], 0
    %16 = vsyncpa [#allocation11], 0
    %17 = vsyncpa [#allocation6], 0
    // Predicated region
    $region2: #{tpu_custom_call.1} parent=1 // pred_check
      _
    $region3: #{tpu_custom_call.1} parent=1 // pred_check_branch
      %19 = sbr.rel (0) target = $region5
    $region4: #{tpu_custom_call.1} parent=1 // pred_region
      %s21 = ssub.s32 1024, 1024
      %22 = vsyncadd [#allocation5], %s21
      %s24 = sshll.u32 [#allocation4], 4
      %s25 = int_to_ptr.vmem [resolvable:$true] %s24
      %27 = dma.hbm_to_vmem [thread:$0]  %s1, 1024, %s25, [#allocation5]
    $region5: #{tpu_custom_call.1} parent=1 // pred_fallthru
      _
    // Predicated region
    $region6: #{tpu_custom_call.1} parent=1 // pred_check
      _
    $region7: #{tpu_custom_call.1} parent=1 // pred_check_branch
      %29 = sbr.rel (0) target = $region9
    $region8: #{tpu_custom_call.1} parent=1 // pred_region
      %s31 = ssub.s32 16384, 16384
      %32 = vsyncadd [#allocation8], %s31
      %s33 = sshll.u32 [#allocation7], 4
      %s34 = int_to_ptr.vmem [resolvable:$true] %s33
      %39 = dma.hbm_to_vmem [thread:$0]  %s2, 16384, %s34, [#allocation8], 128, 128, 8
    $region9: #{tpu_custom_call.1} parent=1 // pred_fallthru
      _
    // Predicated region
    $region10: #{tpu_custom_call.1} parent=1 // pred_check
      _
    $region11: #{tpu_custom_call.1} parent=1 // pred_check_branch
      %41 = sbr.rel (0) target = $region13
    $region12: #{tpu_custom_call.1} parent=1 // pred_region
      _
    $region13: #{tpu_custom_call.1} parent=1 // pred_fallthru
      _
    // Predicated region
    $region14: #{tpu_custom_call.1} parent=1 // pred_check
      _
    $region15: #{tpu_custom_call.1} parent=1 // pred_check_branch
      %43 = sbr.rel (0) target = $region17
    $region16: #{tpu_custom_call.1} parent=1 // pred_region
      %s45 = ssub.s32 2048, 2048
      %46 = vsyncadd [#allocation8], %s45
      %s47 = sshll.u32 [#allocation9], 4
      %s48 = int_to_ptr.vmem [resolvable:$true] %s47
      %53 = dma.hbm_to_vmem [thread:$0]  %s4, 2048, %s48, [#allocation8], 128, 128, 8
    $region17: #{tpu_custom_call.1} parent=1 // pred_fallthru
      _
    // Predicated region
    $region18: #{tpu_custom_call.1} parent=1 // pred_check
      _
    $region19: #{tpu_custom_call.1} parent=1 // pred_check_branch
      %55 = sbr.rel (0) target = $region21
    $region20: #{tpu_custom_call.1} parent=1 // pred_region
      _
    $region21: #{tpu_custom_call.1} parent=1 // pred_fallthru
      _
    // Predicated region
    $region22: #{tpu_custom_call.1} parent=1 // pred_check
      _
    $region23: #{tpu_custom_call.1} parent=1 // pred_check_branch
      %57 = sbr.rel (0) target = $region25
    $region24: #{tpu_custom_call.1} parent=1 // pred_region
      %s59 = ssub.s32 2048, 2048
      %60 = vsyncadd [#allocation11], %s59
      %s61 = sshll.u32 [#allocation10], 4
      %s62 = int_to_ptr.vmem [resolvable:$true] %s61
      %67 = dma.hbm_to_vmem [thread:$0]  %s6, 2048, %s62, [#allocation11], 128, 128, 8
    $region25: #{tpu_custom_call.1} parent=1 // pred_fallthru
      _
    // Predicated region
    $region26: #{tpu_custom_call.1} parent=1 // pred_check
      _
    $region27: #{tpu_custom_call.1} parent=1 // pred_check_branch
      %69 = sbr.rel (0) target = $region29
    $region28: #{tpu_custom_call.1} parent=1 // pred_region
      _
    $region29: #{tpu_custom_call.1} parent=1 // pred_fallthru
      _
    // Predicated region
    $region30: #{tpu_custom_call.1} parent=1 // pred_check
      _
    $region31: #{tpu_custom_call.1} parent=1 // pred_check_branch
      %71 = sbr.rel (0) target = $region33
    $region32: #{tpu_custom_call.1} parent=1 // pred_region
      %72 = dma.done [#allocation5], 1024
    $region33: #{tpu_custom_call.1} parent=1 // pred_fallthru
      _
    // Predicated region
    $region34: #{tpu_custom_call.1} parent=1 // pred_check
      _
    $region35: #{tpu_custom_call.1} parent=1 // pred_check_branch
      %74 = sbr.rel (0) target = $region37
    $region36: #{tpu_custom_call.1} parent=1 // pred_region
      %75 = dma.done [#allocation8], 16384
    $region37: #{tpu_custom_call.1} parent=1 // pred_fallthru
      _
    // Predicated region
    $region38: #{tpu_custom_call.1} parent=1 // pred_check
      _
    $region39: #{tpu_custom_call.1} parent=1 // pred_check_branch
      %77 = sbr.rel (0) target = $region41
    $region40: #{tpu_custom_call.1} parent=1 // pred_region
      %78 = dma.done [#allocation8], 2048
    $region41: #{tpu_custom_call.1} parent=1 // pred_fallthru
      _
    // Predicated region
    $region42: #{tpu_custom_call.1} parent=1 // pred_check
      _
    $region43: #{tpu_custom_call.1} parent=1 // pred_check_branch
      %80 = sbr.rel (0) target = $region45
    $region44: #{tpu_custom_call.1} parent=1 // pred_region
      %81 = dma.done [#allocation11], 2048
    $region45: #{tpu_custom_call.1} parent=1 // pred_fallthru
      _
    %s82 = sld [smem:[#allocation3]]
    %s83 = smul.u32 0, 8
    %v84 = vld [vmem:[#allocation4] sm:$0xff]
    %v85 = vld [vmem:[#allocation4 + $0x8] sm:$0xff]
    %v86 = vld [vmem:[#allocation4 + $0x10] sm:$0xff]
    %v87 = vld [vmem:[#allocation4 + $0x18] sm:$0xff]
    %v88 = vld [vmem:[#allocation4 + $0x20] sm:$0xff]
    %v89 = vld [vmem:[#allocation4 + $0x28] sm:$0xff]
    %v90 = vld [vmem:[#allocation4 + $0x30] sm:$0xff]
    %v91 = vld [vmem:[#allocation4 + $0x38] sm:$0xff]
    %v92 = vld [vmem:[#allocation7] sm:$0xff]
    %v93 = vld [vmem:[#allocation7 + $0x8] sm:$0xff]
    %v94 = vld [vmem:[#allocation7 + $0x10] sm:$0xff]
    %v95 = vld [vmem:[#allocation7 + $0x18] sm:$0xff]
    %v96 = vld [vmem:[#allocation7 + $0x20] sm:$0xff]
    %v97 = vld [vmem:[#allocation7 + $0x28] sm:$0xff]
    %v98 = vld [vmem:[#allocation7 + $0x30] sm:$0xff]
    %v99 = vld [vmem:[#allocation7 + $0x38] sm:$0xff]
    %v100 = vld [vmem:[#allocation7 + $0x40] sm:$0xff]
    %v101 = vld [vmem:[#allocation7 + $0x48] sm:$0xff]
    %v102 = vld [vmem:[#allocation7 + $0x50] sm:$0xff]
    %v103 = vld [vmem:[#allocation7 + $0x58] sm:$0xff]
    %v104 = vld [vmem:[#allocation7 + $0x60] sm:$0xff]
    %v105 = vld [vmem:[#allocation7 + $0x68] sm:$0xff]
    %v106 = vld [vmem:[#allocation7 + $0x70] sm:$0xff]
    %v107 = vld [vmem:[#allocation7 + $0x78] sm:$0xff]
    %v108 = vld [vmem:[#allocation7 + $0x80] sm:$0xff]
    %v109 = vld [vmem:[#allocation7 + $0x88] sm:$0xff]
    %v110 = vld [vmem:[#allocation7 + $0x90] sm:$0xff]
    %v111 = vld [vmem:[#allocation7 + $0x98] sm:$0xff]
    %v112 = vld [vmem:[#allocation7 + $0xa0] sm:$0xff]
    %v113 = vld [vmem:[#allocation7 + $0xa8] sm:$0xff]
    %v114 = vld [vmem:[#allocation7 + $0xb0] sm:$0xff]
    %v115 = vld [vmem:[#allocation7 + $0xb8] sm:$0xff]
    %v116 = vld [vmem:[#allocation7 + $0xc0] sm:$0xff]
    %v117 = vld [vmem:[#allocation7 + $0xc8] sm:$0xff]
    %v118 = vld [vmem:[#allocation7 + $0xd0] sm:$0xff]
    %v119 = vld [vmem:[#allocation7 + $0xd8] sm:$0xff]
    %v120 = vld [vmem:[#allocation7 + $0xe0] sm:$0xff]
    %v121 = vld [vmem:[#allocation7 + $0xe8] sm:$0xff]
    %v122 = vld [vmem:[#allocation7 + $0xf0] sm:$0xff]
    %v123 = vld [vmem:[#allocation7 + $0xf8] sm:$0xff]
    %v124 = vld [vmem:[#allocation7 + $0x100] sm:$0xff]
    %v125 = vld [vmem:[#allocation7 + $0x108] sm:$0xff]
    %v126 = vld [vmem:[#allocation7 + $0x110] sm:$0xff]
    %v127 = vld [vmem:[#allocation7 + $0x118] sm:$0xff]
    %v128 = vld [vmem:[#allocation7 + $0x120] sm:$0xff]
    %v129 = vld [vmem:[#allocation7 + $0x128] sm:$0xff]
    %v130 = vld [vmem:[#allocation7 + $0x130] sm:$0xff]
    %v131 = vld [vmem:[#allocation7 + $0x138] sm:$0xff]
    %v132 = vld [vmem:[#allocation7 + $0x140] sm:$0xff]
    %v133 = vld [vmem:[#allocation7 + $0x148] sm:$0xff]
    %v134 = vld [vmem:[#allocation7 + $0x150] sm:$0xff]
    %v135 = vld [vmem:[#allocation7 + $0x158] sm:$0xff]
    %v136 = vld [vmem:[#allocation7 + $0x160] sm:$0xff]
    %v137 = vld [vmem:[#allocation7 + $0x168] sm:$0xff]
    %v138 = vld [vmem:[#allocation7 + $0x170] sm:$0xff]
    %v139 = vld [vmem:[#allocation7 + $0x178] sm:$0xff]
    %v140 = vld [vmem:[#allocation7 + $0x180] sm:$0xff]
    %v141 = vld [vmem:[#allocation7 + $0x188] sm:$0xff]
    %v142 = vld [vmem:[#allocation7 + $0x190] sm:$0xff]
    %v143 = vld [vmem:[#allocation7 + $0x198] sm:$0xff]
    %v144 = vld [vmem:[#allocation7 + $0x1a0] sm:$0xff]
    %v145 = vld [vmem:[#allocation7 + $0x1a8] sm:$0xff]
    %v146 = vld [vmem:[#allocation7 + $0x1b0] sm:$0xff]
    %v147 = vld [vmem:[#allocation7 + $0x1b8] sm:$0xff]
    %v148 = vld [vmem:[#allocation7 + $0x1c0] sm:$0xff]
    %v149 = vld [vmem:[#allocation7 + $0x1c8] sm:$0xff]
    %v150 = vld [vmem:[#allocation7 + $0x1d0] sm:$0xff]
    %v151 = vld [vmem:[#allocation7 + $0x1d8] sm:$0xff]
    %v152 = vld [vmem:[#allocation7 + $0x1e0] sm:$0xff]
    %v153 = vld [vmem:[#allocation7 + $0x1e8] sm:$0xff]
    %v154 = vld [vmem:[#allocation7 + $0x1f0] sm:$0xff]
    %v155 = vld [vmem:[#allocation7 + $0x1f8] sm:$0xff]
    %v156 = vld [vmem:[#allocation7 + $0x200] sm:$0xff]
    %v157 = vld [vmem:[#allocation7 + $0x208] sm:$0xff]
    %v158 = vld [vmem:[#allocation7 + $0x210] sm:$0xff]
    %v159 = vld [vmem:[#allocation7 + $0x218] sm:$0xff]
    %v160 = vld [vmem:[#allocation7 + $0x220] sm:$0xff]
    %v161 = vld [vmem:[#allocation7 + $0x228] sm:$0xff]
    %v162 = vld [vmem:[#allocation7 + $0x230] sm:$0xff]
    %v163 = vld [vmem:[#allocation7 + $0x238] sm:$0xff]
    %v164 = vld [vmem:[#allocation7 + $0x240] sm:$0xff]
    %v165 = vld [vmem:[#allocation7 + $0x248] sm:$0xff]
    %v166 = vld [vmem:[#allocation7 + $0x250] sm:$0xff]
    %v167 = vld [vmem:[#allocation7 + $0x258] sm:$0xff]
    %v168 = vld [vmem:[#allocation7 + $0x260] sm:$0xff]
    %v169 = vld [vmem:[#allocation7 + $0x268] sm:$0xff]
    %v170 = vld [vmem:[#allocation7 + $0x270] sm:$0xff]
    %v171 = vld [vmem:[#allocation7 + $0x278] sm:$0xff]
    %v172 = vld [vmem:[#allocation7 + $0x280] sm:$0xff]
    %v173 = vld [vmem:[#allocation7 + $0x288] sm:$0xff]
    %v174 = vld [vmem:[#allocation7 + $0x290] sm:$0xff]
    %v175 = vld [vmem:[#allocation7 + $0x298] sm:$0xff]
    %v176 = vld [vmem:[#allocation7 + $0x2a0] sm:$0xff]
    %v177 = vld [vmem:[#allocation7 + $0x2a8] sm:$0xff]
    %v178 = vld [vmem:[#allocation7 + $0x2b0] sm:$0xff]
    %v179 = vld [vmem:[#allocation7 + $0x2b8] sm:$0xff]
    %v180 = vld [vmem:[#allocation7 + $0x2c0] sm:$0xff]
    %v181 = vld [vmem:[#allocation7 + $0x2c8] sm:$0xff]
    %v182 = vld [vmem:[#allocation7 + $0x2d0] sm:$0xff]
    %v183 = vld [vmem:[#allocation7 + $0x2d8] sm:$0xff]
    %v184 = vld [vmem:[#allocation7 + $0x2e0] sm:$0xff]
    %v185 = vld [vmem:[#allocation7 + $0x2e8] sm:$0xff]
    %v186 = vld [vmem:[#allocation7 + $0x2f0] sm:$0xff]
    %v187 = vld [vmem:[#allocation7 + $0x2f8] sm:$0xff]
    %v188 = vld [vmem:[#allocation7 + $0x300] sm:$0xff]
    %v189 = vld [vmem:[#allocation7 + $0x308] sm:$0xff]
    %v190 = vld [vmem:[#allocation7 + $0x310] sm:$0xff]
    %v191 = vld [vmem:[#allocation7 + $0x318] sm:$0xff]
    %v192 = vld [vmem:[#allocation7 + $0x320] sm:$0xff]
    %v193 = vld [vmem:[#allocation7 + $0x328] sm:$0xff]
    %v194 = vld [vmem:[#allocation7 + $0x330] sm:$0xff]
    %v195 = vld [vmem:[#allocation7 + $0x338] sm:$0xff]
    %v196 = vld [vmem:[#allocation7 + $0x340] sm:$0xff]
    %v197 = vld [vmem:[#allocation7 + $0x348] sm:$0xff]
    %v198 = vld [vmem:[#allocation7 + $0x350] sm:$0xff]
    %v199 = vld [vmem:[#allocation7 + $0x358] sm:$0xff]
    %v200 = vld [vmem:[#allocation7 + $0x360] sm:$0xff]
    %v201 = vld [vmem:[#allocation7 + $0x368] sm:$0xff]
    %v202 = vld [vmem:[#allocation7 + $0x370] sm:$0xff]
    %v203 = vld [vmem:[#allocation7 + $0x378] sm:$0xff]
    %v204 = vld [vmem:[#allocation7 + $0x380] sm:$0xff]
    %v205 = vld [vmem:[#allocation7 + $0x388] sm:$0xff]
    %v206 = vld [vmem:[#allocation7 + $0x390] sm:$0xff]
    %v207 = vld [vmem:[#allocation7 + $0x398] sm:$0xff]
    %v208 = vld [vmem:[#allocation7 + $0x3a0] sm:$0xff]
    %v209 = vld [vmem:[#allocation7 + $0x3a8] sm:$0xff]
    %v210 = vld [vmem:[#allocation7 + $0x3b0] sm:$0xff]
    %v211 = vld [vmem:[#allocation7 + $0x3b8] sm:$0xff]
    %v212 = vld [vmem:[#allocation7 + $0x3c0] sm:$0xff]
    %v213 = vld [vmem:[#allocation7 + $0x3c8] sm:$0xff]
    %v214 = vld [vmem:[#allocation7 + $0x3d0] sm:$0xff]
    %v215 = vld [vmem:[#allocation7 + $0x3d8] sm:$0xff]
    %v216 = vld [vmem:[#allocation7 + $0x3e0] sm:$0xff]
    %v217 = vld [vmem:[#allocation7 + $0x3e8] sm:$0xff]
    %v218 = vld [vmem:[#allocation7 + $0x3f0] sm:$0xff]
    %v219 = vld [vmem:[#allocation7 + $0x3f8] sm:$0xff]
    %v220 = vld [vmem:[%s3] sm:$0x1]
    %v222 = vlaneseq
    %v223 = vshrl.u32 %v222, 7
    %v224 = vsub.s32 0, %v223
    %v225 = vrot.slane %v220, %v224
    %227 = vmatprep.subr.mxu0 0.0
    %228 = vmatpush1.msra.mxu0 %v107
    %229 = vmatprep.subr.mxu0 0.0
    %230 = vmatpush1.msra.mxu0 %v106
    %231 = vmatprep.subr.mxu0 0.0
    %232 = vmatpush1.msra.mxu0 %v105
    %233 = vmatprep.subr.mxu0 0.0
    %234 = vmatpush1.msra.mxu0 %v104
    %235 = vmatprep.subr.mxu0 0.0
    %236 = vmatpush1.msra.mxu0 %v103
    %237 = vmatprep.subr.mxu0 0.0
    %238 = vmatpush1.msra.mxu0 %v102
    %239 = vmatprep.subr.mxu0 0.0
    %240 = vmatpush1.msra.mxu0 %v101
    %241 = vmatprep.subr.mxu0 0.0
    %242 = vmatpush1.msra.mxu0 %v100
    %243 = vmatprep.subr.mxu0 0.0
    %244 = vmatpush1.msra.mxu0 %v99
    %245 = vmatprep.subr.mxu0 0.0
    %246 = vmatpush1.msra.mxu0 %v98
    %247 = vmatprep.subr.mxu0 0.0
    %248 = vmatpush1.msra.mxu0 %v97
    %249 = vmatprep.subr.mxu0 0.0
    %250 = vmatpush1.msra.mxu0 %v96
    %251 = vmatprep.subr.mxu0 0.0
    %252 = vmatpush1.msra.mxu0 %v95
    %253 = vmatprep.subr.mxu0 0.0
    %254 = vmatpush1.msra.mxu0 %v94
    %255 = vmatprep.subr.mxu0 0.0
    %256 = vmatpush1.msra.mxu0 %v93
    %257 = vmatprep.subr.mxu0 0.0
    %258 = vmatpush1.msra.mxu0 %v92
    %259 = vmatprep.subr.mxu0 0.0
    %260 = vmatpush2.msra.mxu0 %v123
    %261 = vmatprep.subr.mxu0 0.0
    %262 = vmatpush2.msra.mxu0 %v122
    %263 = vmatprep.subr.mxu0 0.0
    %264 = vmatpush2.msra.mxu0 %v121
    %265 = vmatprep.subr.mxu0 0.0
    %266 = vmatpush2.msra.mxu0 %v120
    %267 = vmatprep.subr.mxu0 0.0
    %268 = vmatpush2.msra.mxu0 %v119
    %269 = vmatprep.subr.mxu0 0.0
    %270 = vmatpush2.msra.mxu0 %v118
    %271 = vmatprep.subr.mxu0 0.0
    %272 = vmatpush2.msra.mxu0 %v117
    %273 = vmatprep.subr.mxu0 0.0
    %274 = vmatpush2.msra.mxu0 %v116
    %275 = vmatprep.subr.mxu0 0.0
    %276 = vmatpush2.msra.mxu0 %v115
    %277 = vmatprep.subr.mxu0 0.0
    %278 = vmatpush2.msra.mxu0 %v114
    %279 = vmatprep.subr.mxu0 0.0
    %280 = vmatpush2.msra.mxu0 %v113
    %281 = vmatprep.subr.mxu0 0.0
    %282 = vmatpush2.msra.mxu0 %v112
    %283 = vmatprep.subr.mxu0 0.0
    %284 = vmatpush2.msra.mxu0 %v111
    %285 = vmatprep.subr.mxu0 0.0
    %286 = vmatpush2.msra.mxu0 %v110
    %287 = vmatprep.subr.mxu0 0.0
    %288 = vmatpush2.msra.mxu0 %v109
    %289 = vmatprep.subr.mxu0 0.0
    %290 = vmatpush2.msra.mxu0 %v108
    %291 = vmatprep.mubr.f32.mxu0 %v85
    %292 = vmatmul.mubr.f32.gmra.mxu0 %v84
    %v293 = vpop.f32.mrf.mxu0
    %v294 = vadd.f32 %v225, %v293
    %v295 = vpop.f32.mrf.mxu0
    %296 = vdwg.mxu0
    %297 = vmatprep.subr.mxu0 0.0
    %298 = vmatpush1.msra.mxu0 %v139
    %299 = vmatprep.subr.mxu0 0.0
    %300 = vmatpush1.msra.mxu0 %v138
    %301 = vmatprep.subr.mxu0 0.0
    %302 = vmatpush1.msra.mxu0 %v137
    %303 = vmatprep.subr.mxu0 0.0
    %304 = vmatpush1.msra.mxu0 %v136
    %305 = vmatprep.subr.mxu0 0.0
    %306 = vmatpush1.msra.mxu0 %v135
    %307 = vmatprep.subr.mxu0 0.0
    %308 = vmatpush1.msra.mxu0 %v134
    %309 = vmatprep.subr.mxu0 0.0
    %310 = vmatpush1.msra.mxu0 %v133
    %311 = vmatprep.subr.mxu0 0.0
    %312 = vmatpush1.msra.mxu0 %v132
    %313 = vmatprep.subr.mxu0 0.0
    %314 = vmatpush1.msra.mxu0 %v131
    %315 = vmatprep.subr.mxu0 0.0
    %316 = vmatpush1.msra.mxu0 %v130
    %317 = vmatprep.subr.mxu0 0.0
    %318 = vmatpush1.msra.mxu0 %v129
    %319 = vmatprep.subr.mxu0 0.0
    %320 = vmatpush1.msra.mxu0 %v128
    %321 = vmatprep.subr.mxu0 0.0
    %322 = vmatpush1.msra.mxu0 %v127
    %323 = vmatprep.subr.mxu0 0.0
    %324 = vmatpush1.msra.mxu0 %v126
    %325 = vmatprep.subr.mxu0 0.0
    %326 = vmatpush1.msra.mxu0 %v125
    %327 = vmatprep.subr.mxu0 0.0
    %328 = vmatpush1.msra.mxu0 %v124
    %329 = vmatprep.subr.mxu0 0.0
    %330 = vmatpush2.msra.mxu0 %v155
    %331 = vmatprep.subr.mxu0 0.0
    %332 = vmatpush2.msra.mxu0 %v154
    %333 = vmatprep.subr.mxu0 0.0
    %334 = vmatpush2.msra.mxu0 %v153
    %335 = vmatprep.subr.mxu0 0.0
    %336 = vmatpush2.msra.mxu0 %v152
    %337 = vmatprep.subr.mxu0 0.0
    %338 = vmatpush2.msra.mxu0 %v151
    %339 = vmatprep.subr.mxu0 0.0
    %340 = vmatpush2.msra.mxu0 %v150
    %341 = vmatprep.subr.mxu0 0.0
    %342 = vmatpush2.msra.mxu0 %v149
    %343 = vmatprep.subr.mxu0 0.0
    %344 = vmatpush2.msra.mxu0 %v148
    %345 = vmatprep.subr.mxu0 0.0
    %346 = vmatpush2.msra.mxu0 %v147
    %347 = vmatprep.subr.mxu0 0.0
    %348 = vmatpush2.msra.mxu0 %v146
    %349 = vmatprep.subr.mxu0 0.0
    %350 = vmatpush2.msra.mxu0 %v145
    %351 = vmatprep.subr.mxu0 0.0
    %352 = vmatpush2.msra.mxu0 %v144
    %353 = vmatprep.subr.mxu0 0.0
    %354 = vmatpush2.msra.mxu0 %v143
    %355 = vmatprep.subr.mxu0 0.0
    %356 = vmatpush2.msra.mxu0 %v142
    %357 = vmatprep.subr.mxu0 0.0
    %358 = vmatpush2.msra.mxu0 %v141
    %359 = vmatprep.subr.mxu0 0.0
    %360 = vmatpush2.msra.mxu0 %v140
    %361 = vmatprep.mubr.f32.mxu0 %v87
    %362 = vmatmul.mubr.f32.gmra.mxu0 %v86
    %v363 = vpop.f32.mrf.mxu0
    %v364 = vadd.f32 %v294, %v363
    %v365 = vpop.f32.mrf.mxu0
    %366 = vdwg.mxu0
    %367 = vmatprep.subr.mxu0 0.0
    %368 = vmatpush1.msra.mxu0 %v171
    %369 = vmatprep.subr.mxu0 0.0
    %370 = vmatpush1.msra.mxu0 %v170
    %371 = vmatprep.subr.mxu0 0.0
    %372 = vmatpush1.msra.mxu0 %v169
    %373 = vmatprep.subr.mxu0 0.0
    %374 = vmatpush1.msra.mxu0 %v168
    %375 = vmatprep.subr.mxu0 0.0
    %376 = vmatpush1.msra.mxu0 %v167
    %377 = vmatprep.subr.mxu0 0.0
    %378 = vmatpush1.msra.mxu0 %v166
    %379 = vmatprep.subr.mxu0 0.0
    %380 = vmatpush1.msra.mxu0 %v165
    %381 = vmatprep.subr.mxu0 0.0
    %382 = vmatpush1.msra.mxu0 %v164
    %383 = vmatprep.subr.mxu0 0.0
    %384 = vmatpush1.msra.mxu0 %v163
    %385 = vmatprep.subr.mxu0 0.0
    %386 = vmatpush1.msra.mxu0 %v162
    %387 = vmatprep.subr.mxu0 0.0
    %388 = vmatpush1.msra.mxu0 %v161
    %389 = vmatprep.subr.mxu0 0.0
    %390 = vmatpush1.msra.mxu0 %v160
    %391 = vmatprep.subr.mxu0 0.0
    %392 = vmatpush1.msra.mxu0 %v159
    %393 = vmatprep.subr.mxu0 0.0
    %394 = vmatpush1.msra.mxu0 %v158
    %395 = vmatprep.subr.mxu0 0.0
    %396 = vmatpush1.msra.mxu0 %v157
    %397 = vmatprep.subr.mxu0 0.0
    %398 = vmatpush1.msra.mxu0 %v156
    %399 = vmatprep.subr.mxu0 0.0
    %400 = vmatpush2.msra.mxu0 %v187
    %401 = vmatprep.subr.mxu0 0.0
    %402 = vmatpush2.msra.mxu0 %v186
    %403 = vmatprep.subr.mxu0 0.0
    %404 = vmatpush2.msra.mxu0 %v185
    %405 = vmatprep.subr.mxu0 0.0
    %406 = vmatpush2.msra.mxu0 %v184
    %407 = vmatprep.subr.mxu0 0.0
    %408 = vmatpush2.msra.mxu0 %v183
    %409 = vmatprep.subr.mxu0 0.0
    %410 = vmatpush2.msra.mxu0 %v182
    %411 = vmatprep.subr.mxu0 0.0
    %412 = vmatpush2.msra.mxu0 %v181
    %413 = vmatprep.subr.mxu0 0.0
    %414 = vmatpush2.msra.mxu0 %v180
    %415 = vmatprep.subr.mxu0 0.0
    %416 = vmatpush2.msra.mxu0 %v179
    %417 = vmatprep.subr.mxu0 0.0
    %418 = vmatpush2.msra.mxu0 %v178
    %419 = vmatprep.subr.mxu0 0.0
    %420 = vmatpush2.msra.mxu0 %v177
    %421 = vmatprep.subr.mxu0 0.0
    %422 = vmatpush2.msra.mxu0 %v176
    %423 = vmatprep.subr.mxu0 0.0
    %424 = vmatpush2.msra.mxu0 %v175
    %425 = vmatprep.subr.mxu0 0.0
    %426 = vmatpush2.msra.mxu0 %v174
    %427 = vmatprep.subr.mxu0 0.0
    %428 = vmatpush2.msra.mxu0 %v173
    %429 = vmatprep.subr.mxu0 0.0
    %430 = vmatpush2.msra.mxu0 %v172
    %431 = vmatprep.mubr.f32.mxu0 %v89
    %432 = vmatmul.mubr.f32.gmra.mxu0 %v88
    %v433 = vpop.f32.mrf.mxu0
    %v434 = vadd.f32 %v364, %v433
    %v435 = vpop.f32.mrf.mxu0
    %436 = vdwg.mxu0
    %437 = vmatprep.subr.mxu0 0.0
    %438 = vmatpush1.msra.mxu0 %v203
    %439 = vmatprep.subr.mxu0 0.0
    %440 = vmatpush1.msra.mxu0 %v202
    %441 = vmatprep.subr.mxu0 0.0
    %442 = vmatpush1.msra.mxu0 %v201
    %443 = vmatprep.subr.mxu0 0.0
    %444 = vmatpush1.msra.mxu0 %v200
    %445 = vmatprep.subr.mxu0 0.0
    %446 = vmatpush1.msra.mxu0 %v199
    %447 = vmatprep.subr.mxu0 0.0
    %448 = vmatpush1.msra.mxu0 %v198
    %449 = vmatprep.subr.mxu0 0.0
    %450 = vmatpush1.msra.mxu0 %v197
    %451 = vmatprep.subr.mxu0 0.0
    %452 = vmatpush1.msra.mxu0 %v196
    %453 = vmatprep.subr.mxu0 0.0
    %454 = vmatpush1.msra.mxu0 %v195
    %455 = vmatprep.subr.mxu0 0.0
    %456 = vmatpush1.msra.mxu0 %v194
    %457 = vmatprep.subr.mxu0 0.0
    %458 = vmatpush1.msra.mxu0 %v193
    %459 = vmatprep.subr.mxu0 0.0
    %460 = vmatpush1.msra.mxu0 %v192
    %461 = vmatprep.subr.mxu0 0.0
    %462 = vmatpush1.msra.mxu0 %v191
    %463 = vmatprep.subr.mxu0 0.0
    %464 = vmatpush1.msra.mxu0 %v190
    %465 = vmatprep.subr.mxu0 0.0
    %466 = vmatpush1.msra.mxu0 %v189
    %467 = vmatprep.subr.mxu0 0.0
    %468 = vmatpush1.msra.mxu0 %v188
    %469 = vmatprep.subr.mxu0 0.0
    %470 = vmatpush2.msra.mxu0 %v219
    %471 = vmatprep.subr.mxu0 0.0
    %472 = vmatpush2.msra.mxu0 %v218
    %473 = vmatprep.subr.mxu0 0.0
    %474 = vmatpush2.msra.mxu0 %v217
    %475 = vmatprep.subr.mxu0 0.0
    %476 = vmatpush2.msra.mxu0 %v216
    %477 = vmatprep.subr.mxu0 0.0
    %478 = vmatpush2.msra.mxu0 %v215
    %479 = vmatprep.subr.mxu0 0.0
    %480 = vmatpush2.msra.mxu0 %v214
    %481 = vmatprep.subr.mxu0 0.0
    %482 = vmatpush2.msra.mxu0 %v213
    %483 = vmatprep.subr.mxu0 0.0
    %484 = vmatpush2.msra.mxu0 %v212
    %485 = vmatprep.subr.mxu0 0.0
    %486 = vmatpush2.msra.mxu0 %v211
    %487 = vmatprep.subr.mxu0 0.0
    %488 = vmatpush2.msra.mxu0 %v210
    %489 = vmatprep.subr.mxu0 0.0
    %490 = vmatpush2.msra.mxu0 %v209
    %491 = vmatprep.subr.mxu0 0.0
    %492 = vmatpush2.msra.mxu0 %v208
    %493 = vmatprep.subr.mxu0 0.0
    %494 = vmatpush2.msra.mxu0 %v207
    %495 = vmatprep.subr.mxu0 0.0
    %496 = vmatpush2.msra.mxu0 %v206
    %497 = vmatprep.subr.mxu0 0.0
    %498 = vmatpush2.msra.mxu0 %v205
    %499 = vmatprep.subr.mxu0 0.0
    %500 = vmatpush2.msra.mxu0 %v204
    %501 = vmatprep.mubr.f32.mxu0 %v91
    %502 = vmatmul.mubr.f32.gmra.mxu0 %v90
    %v503 = vpop.f32.mrf.mxu0
    %v504 = vadd.f32 %v434, %v503
    %v505 = vpop.f32.mrf.mxu0
    %506 = vdwg.mxu0
    %v507 = vmax.f32 %v504, 0.0
    %v508 = vlaneseq
    %v509 = vshrl.u32 %v508, 7
    %v510 = vstv %s83
    %v511 = vadd.s32 %v509, %v510
    %v512 = vlaneseq
    %v513 = vand.u32 %v512, 127
    %v514 = vmul.u32 %v511, 2654435769
    %v515 = vmul.u32 %v513, 3432918353
    %v516 = vadd.s32 %v514, %v515
    %v517 = vstv %s82
    %v518 = vadd.s32 %v516, %v517
    %v519 = vadd.s32 %v518, 2654435769
    %v520 = vshra.s32 %v519, 16
    %v521 = vand.u32 %v520, 65535
    %v522 = vxor.u32 %v519, %v521
    %v523 = vmul.u32 %v522, 2246822507
    %v524 = vshra.s32 %v523, 13
    %v525 = vand.u32 %v524, 524287
    %v526 = vxor.u32 %v523, %v525
    %v527 = vmul.u32 %v526, 3266489909
    %v528 = vshra.s32 %v527, 16
    %v529 = vand.u32 %v528, 65535
    %v530 = vxor.u32 %v527, %v529
    %v531 = vand.u32 %v530, 2147483647
    %vm532 = vcmp.lt.s32.totalorder %v531, 1073741824
    %v533 = vmul.f32 %v507, 2.0
    %v534 = vsel %vm532, %v533, 0.0
    %v535 = vld [vmem:[#allocation9] sm:$0xff]
    %v536 = vld [vmem:[#allocation9 + $0x8] sm:$0xff]
    %v537 = vld [vmem:[#allocation9 + $0x10] sm:$0xff]
    %v538 = vld [vmem:[#allocation9 + $0x18] sm:$0xff]
    %v539 = vld [vmem:[#allocation9 + $0x20] sm:$0xff]
    %v540 = vld [vmem:[#allocation9 + $0x28] sm:$0xff]
    %v541 = vld [vmem:[#allocation9 + $0x30] sm:$0xff]
    %v542 = vld [vmem:[#allocation9 + $0x38] sm:$0xff]
    %v543 = vld [vmem:[#allocation9 + $0x40] sm:$0xff]
    %v544 = vld [vmem:[#allocation9 + $0x48] sm:$0xff]
    %v545 = vld [vmem:[#allocation9 + $0x50] sm:$0xff]
    %v546 = vld [vmem:[#allocation9 + $0x58] sm:$0xff]
    %v547 = vld [vmem:[#allocation9 + $0x60] sm:$0xff]
    %v548 = vld [vmem:[#allocation9 + $0x68] sm:$0xff]
    %v549 = vld [vmem:[#allocation9 + $0x70] sm:$0xff]
    %v550 = vld [vmem:[#allocation9 + $0x78] sm:$0xff]
    %v551 = vld [vmem:[%s5] sm:$0x1]
    %v553 = vlaneseq
    %v554 = vshrl.u32 %v553, 7
    %v555 = vsub.s32 0, %v554
    %v556 = vrot.slane %v551, %v555
    %558 = vmatprep.subr.mxu0 0.0
    %559 = vmatpush1.msra.mxu0 %v550
    %560 = vmatprep.subr.mxu0 0.0
    %561 = vmatpush1.msra.mxu0 %v549
    %562 = vmatprep.subr.mxu0 0.0
    %563 = vmatpush1.msra.mxu0 %v548
    %564 = vmatprep.subr.mxu0 0.0
    %565 = vmatpush1.msra.mxu0 %v547
    %566 = vmatprep.subr.mxu0 0.0
    %567 = vmatpush1.msra.mxu0 %v546
    %568 = vmatprep.subr.mxu0 0.0
    %569 = vmatpush1.msra.mxu0 %v545
    %570 = vmatprep.subr.mxu0 0.0
    %571 = vmatpush1.msra.mxu0 %v544
    %572 = vmatprep.subr.mxu0 0.0
    %573 = vmatpush1.msra.mxu0 %v543
    %574 = vmatprep.subr.mxu0 0.0
    %575 = vmatpush1.msra.mxu0 %v542
    %576 = vmatprep.subr.mxu0 0.0
    %577 = vmatpush1.msra.mxu0 %v541
    %578 = vmatprep.subr.mxu0 0.0
    %579 = vmatpush1.msra.mxu0 %v540
    %580 = vmatprep.subr.mxu0 0.0
    %581 = vmatpush1.msra.mxu0 %v539
    %582 = vmatprep.subr.mxu0 0.0
    %583 = vmatpush1.msra.mxu0 %v538
    %584 = vmatprep.subr.mxu0 0.0
    %585 = vmatpush1.msra.mxu0 %v537
    %586 = vmatprep.subr.mxu0 0.0
    %587 = vmatpush1.msra.mxu0 %v536
    %588 = vmatprep.subr.mxu0 0.0
    %589 = vmatpush1.msra.mxu0 %v535
    %590 = vmatprep.subr.mxu0 0.0
    %591 = vmatpush2.msra.mxu0 0.0
    %592 = vmatprep.subr.mxu0 0.0
    %593 = vmatpush2.msra.mxu0 0.0
    %594 = vmatprep.subr.mxu0 0.0
    %595 = vmatpush2.msra.mxu0 0.0
    %596 = vmatprep.subr.mxu0 0.0
    %597 = vmatpush2.msra.mxu0 0.0
    %598 = vmatprep.subr.mxu0 0.0
    %599 = vmatpush2.msra.mxu0 0.0
    %600 = vmatprep.subr.mxu0 0.0
    %601 = vmatpush2.msra.mxu0 0.0
    %602 = vmatprep.subr.mxu0 0.0
    %603 = vmatpush2.msra.mxu0 0.0
    %604 = vmatprep.subr.mxu0 0.0
    %605 = vmatpush2.msra.mxu0 0.0
    %606 = vmatprep.subr.mxu0 0.0
    %607 = vmatpush2.msra.mxu0 0.0
    %608 = vmatprep.subr.mxu0 0.0
    %609 = vmatpush2.msra.mxu0 0.0
    %610 = vmatprep.subr.mxu0 0.0
    %611 = vmatpush2.msra.mxu0 0.0
    %612 = vmatprep.subr.mxu0 0.0
    %613 = vmatpush2.msra.mxu0 0.0
    %614 = vmatprep.subr.mxu0 0.0
    %615 = vmatpush2.msra.mxu0 0.0
    %616 = vmatprep.subr.mxu0 0.0
    %617 = vmatpush2.msra.mxu0 0.0
    %618 = vmatprep.subr.mxu0 0.0
    %619 = vmatpush2.msra.mxu0 0.0
    %620 = vmatprep.subr.mxu0 0.0
    %621 = vmatpush2.msra.mxu0 0.0
    %622 = vmatprep.mubr.f32.mxu0 0.0
    %623 = vmatmul.mubr.f32.gmra.mxu0 %v534
    %v624 = vpop.f32.mrf.mxu0
    %v625 = vadd.f32 %v556, %v624
    %v626 = vpop.f32.mrf.mxu0
    %627 = vdwg.mxu0
    %v628 = vmax.f32 %v625, 0.0
    %v629 = vadd.s32 %v518, 1013904242
    %v630 = vshra.s32 %v629, 16
    %v631 = vand.u32 %v630, 65535
    %v632 = vxor.u32 %v629, %v631
    %v633 = vmul.u32 %v632, 2246822507
    %v634 = vshra.s32 %v633, 13
    %v635 = vand.u32 %v634, 524287
    %v636 = vxor.u32 %v633, %v635
    %v637 = vmul.u32 %v636, 3266489909
    %v638 = vshra.s32 %v637, 16
    %v639 = vand.u32 %v638, 65535
    %v640 = vxor.u32 %v637, %v639
    %v641 = vand.u32 %v640, 2147483647
    %vm642 = vcmp.lt.s32.totalorder %v641, 1073741824
    %v643 = vmul.f32 %v628, 2.0
    %v644 = vsel %vm642, %v643, 0.0
    %v645 = vld [vmem:[#allocation10] sm:$0xff]
    %v646 = vld [vmem:[#allocation10 + $0x8] sm:$0xff]
    %v647 = vld [vmem:[#allocation10 + $0x10] sm:$0xff]
    %v648 = vld [vmem:[#allocation10 + $0x18] sm:$0xff]
    %v649 = vld [vmem:[#allocation10 + $0x20] sm:$0xff]
    %v650 = vld [vmem:[#allocation10 + $0x28] sm:$0xff]
    %v651 = vld [vmem:[#allocation10 + $0x30] sm:$0xff]
    %v652 = vld [vmem:[#allocation10 + $0x38] sm:$0xff]
    %v653 = vld [vmem:[#allocation10 + $0x40] sm:$0xff]
    %v654 = vld [vmem:[#allocation10 + $0x48] sm:$0xff]
    %v655 = vld [vmem:[#allocation10 + $0x50] sm:$0xff]
    %v656 = vld [vmem:[#allocation10 + $0x58] sm:$0xff]
    %v657 = vld [vmem:[#allocation10 + $0x60] sm:$0xff]
    %v658 = vld [vmem:[#allocation10 + $0x68] sm:$0xff]
    %v659 = vld [vmem:[#allocation10 + $0x70] sm:$0xff]
    %v660 = vld [vmem:[#allocation10 + $0x78] sm:$0xff]
    %v661 = vld [vmem:[%s7] sm:$0x1]
    %v663 = vlaneseq
    %v664 = vshrl.u32 %v663, 7
    %v665 = vsub.s32 0, %v664
    %v666 = vrot.slane %v661, %v665
    %668 = vmatprep.subr.mxu0 0.0
    %669 = vmatpush1.msra.mxu0 %v660
    %670 = vmatprep.subr.mxu0 0.0
    %671 = vmatpush1.msra.mxu0 %v659
    %672 = vmatprep.subr.mxu0 0.0
    %673 = vmatpush1.msra.mxu0 %v658
    %674 = vmatprep.subr.mxu0 0.0
    %675 = vmatpush1.msra.mxu0 %v657
    %676 = vmatprep.subr.mxu0 0.0
    %677 = vmatpush1.msra.mxu0 %v656
    %678 = vmatprep.subr.mxu0 0.0
    %679 = vmatpush1.msra.mxu0 %v655
    %680 = vmatprep.subr.mxu0 0.0
    %681 = vmatpush1.msra.mxu0 %v654
    %682 = vmatprep.subr.mxu0 0.0
    %683 = vmatpush1.msra.mxu0 %v653
    %684 = vmatprep.subr.mxu0 0.0
    %685 = vmatpush1.msra.mxu0 %v652
    %686 = vmatprep.subr.mxu0 0.0
    %687 = vmatpush1.msra.mxu0 %v651
    %688 = vmatprep.subr.mxu0 0.0
    %689 = vmatpush1.msra.mxu0 %v650
    %690 = vmatprep.subr.mxu0 0.0
    %691 = vmatpush1.msra.mxu0 %v649
    %692 = vmatprep.subr.mxu0 0.0
    %693 = vmatpush1.msra.mxu0 %v648
    %694 = vmatprep.subr.mxu0 0.0
    %695 = vmatpush1.msra.mxu0 %v647
    %696 = vmatprep.subr.mxu0 0.0
    %697 = vmatpush1.msra.mxu0 %v646
    %698 = vmatprep.subr.mxu0 0.0
    %699 = vmatpush1.msra.mxu0 %v645
    %700 = vmatprep.subr.mxu0 0.0
    %701 = vmatpush2.msra.mxu0 0.0
    %702 = vmatprep.subr.mxu0 0.0
    %703 = vmatpush2.msra.mxu0 0.0
    %704 = vmatprep.subr.mxu0 0.0
    %705 = vmatpush2.msra.mxu0 0.0
    %706 = vmatprep.subr.mxu0 0.0
    %707 = vmatpush2.msra.mxu0 0.0
    %708 = vmatprep.subr.mxu0 0.0
    %709 = vmatpush2.msra.mxu0 0.0
    %710 = vmatprep.subr.mxu0 0.0
    %711 = vmatpush2.msra.mxu0 0.0
    %712 = vmatprep.subr.mxu0 0.0
    %713 = vmatpush2.msra.mxu0 0.0
    %714 = vmatprep.subr.mxu0 0.0
    %715 = vmatpush2.msra.mxu0 0.0
    %716 = vmatprep.subr.mxu0 0.0
    %717 = vmatpush2.msra.mxu0 0.0
    %718 = vmatprep.subr.mxu0 0.0
    %719 = vmatpush2.msra.mxu0 0.0
    %720 = vmatprep.subr.mxu0 0.0
    %721 = vmatpush2.msra.mxu0 0.0
    %722 = vmatprep.subr.mxu0 0.0
    %723 = vmatpush2.msra.mxu0 0.0
    %724 = vmatprep.subr.mxu0 0.0
    %725 = vmatpush2.msra.mxu0 0.0
    %726 = vmatprep.subr.mxu0 0.0
    %727 = vmatpush2.msra.mxu0 0.0
    %728 = vmatprep.subr.mxu0 0.0
    %729 = vmatpush2.msra.mxu0 0.0
    %730 = vmatprep.subr.mxu0 0.0
    %731 = vmatpush2.msra.mxu0 0.0
    %732 = vmatprep.mubr.f32.mxu0 0.0
    %733 = vmatmul.mubr.f32.gmra.mxu0 %v644
    %v734 = vpop.f32.mrf.mxu0
    %v735 = vadd.f32 %v666, %v734
    %v736 = vpop.f32.mrf.mxu0
    %737 = vdwg.mxu0
    %738 = vst [vmem:[#allocation12] sm:$0xff] %v735
    // Predicated region
    $region46: #{tpu_custom_call.1} parent=1 // pred_check
      _
    $region47: #{tpu_custom_call.1} parent=1 // pred_check_branch
      %740 = sbr.rel (0) target = $region49
    $region48: #{tpu_custom_call.1} parent=1 // pred_region
      %s742 = ssub.s32 128, 128
      %743 = vsyncadd [#allocation6], %s742
      %s745 = sshll.u32 [#allocation12], 4
      %s746 = int_to_ptr.vmem [resolvable:$true] %s745
      %748 = dma.vmem_to_hbm [thread:$0]  %s746, 128, %s8, [#allocation6]
    $region49: #{tpu_custom_call.1} parent=1 // pred_fallthru
      _
    // Predicated region
    $region50: #{tpu_custom_call.1} parent=1 // pred_check
      _
    $region51: #{tpu_custom_call.1} parent=1 // pred_check_branch
      %750 = sbr.rel (0) target = $region53
    $region52: #{tpu_custom_call.1} parent=1 // pred_region
      %751 = dma.done [#allocation6], 128
    $region53: #{tpu_custom_call.1} parent=1 // pred_fallthru
      _
    %752 = vsyncpa [#allocation5], 1
    %753 = vsyncpa [#allocation8], 1
    %754 = vsyncpa [#allocation11], 1
    %755 = vsyncpa [#allocation6], 1

</llo_original>
